<compile_context>
chip_gen: v5e
topology: v5e:2x2
jax: 0.10.0
libtpu: 0.0.40
codegen_flags: <defaults>
</compile_context>

<pallas_src>
import jax
import jax.numpy as jnp
from jax.experimental import pallas as pl
from jax.experimental.pallas import tpu as pltpu


def _round_up(x: int, m: int) -> int:
    return ((x + m - 1) // m) * m


# ---------------------------------------------------------------------------
# Kernel 1: fc_out = relu(source @ W_t + b), gridded over source-row tiles.
# ---------------------------------------------------------------------------
def _fc_kernel(src_ref, w_ref, b_ref, fc_ref):
    acc = jnp.dot(src_ref[...], w_ref[...], preferred_element_type=jnp.float32)
    acc = acc + b_ref[...]                       # bias broadcast [1, dim_out_p]
    fc_ref[...] = jnp.maximum(acc, 0.0).astype(fc_ref.dtype)


# ---------------------------------------------------------------------------
# Kernel 2: gridded over N_tgt row tiles.
#   collect = attention_tile @ fc_out
#   out     = collect * reciprocal(attention_tile.sum(1) + 1e-7)
# fc stays VMEM-resident (constant index_map) across all grid steps.
# ---------------------------------------------------------------------------
def _collect_kernel(att_ref, fc_ref, out_ref):
    att = att_ref[...]
    denom = jnp.sum(att.astype(jnp.float32), axis=1, keepdims=True) + 1e-7
    collect = jnp.dot(att, fc_ref[...], preferred_element_type=jnp.float32)
    out_ref[...] = (collect * pl.reciprocal(denom, approx=True)).astype(out_ref.dtype)


def collection_unit(source, attention_base, w_t, b, *,
                    row_tile=512, src_tile=512, use_bf16=True):
    """source: [N_src, dim_in], attention_base: [N_tgt, N_src],
       w_t: [dim_in, dim_out] (pre-transposed Linear weight), b: [dim_out]
       -> [N_tgt, dim_out] float32"""
    n_src, dim_in = source.shape
    n_tgt, n_src_a = attention_base.shape
    assert n_src_a == n_src
    dim_out = w_t.shape[1]

    # Lane-dense padding of the feature axis (multiple of 128).
    dim_out_p = _round_up(dim_out, 128)
    # Row-tile sizes clamped to the (8-aligned) problem size.
    ts = min(src_tile, _round_up(n_src, 8))
    n_src_p = _round_up(n_src, ts)
    tm = min(row_tile, _round_up(n_tgt, 8))
    n_tgt_p = _round_up(n_tgt, tm)

    mm_dtype = jnp.bfloat16 if use_bf16 else jnp.float32
    itemsize = jnp.dtype(mm_dtype).itemsize

    # Zero-padded / bf16-cast operands.  Padding is exact:
    #  * padded W / b columns are zero -> fc padded columns are relu(0) = 0
    #  * padded attention rows/cols are zero -> padded outputs are 0, and
    #    padded source rows never contribute (their attention columns are 0).
    src_p = jnp.zeros((n_src_p, dim_in), mm_dtype).at[:n_src].set(
        source.astype(mm_dtype))
    w_p = jnp.zeros((dim_in, dim_out_p), mm_dtype).at[:, :dim_out].set(
        w_t.astype(mm_dtype))
    b_p = jnp.zeros((1, dim_out_p), jnp.float32).at[0, :dim_out].set(
        b.astype(jnp.float32))
    att_p = jnp.zeros((n_tgt_p, n_src_p), mm_dtype).at[:n_tgt, :n_src].set(
        attention_base.astype(mm_dtype))

    cparams = pltpu.CompilerParams(
        dimension_semantics=("parallel",),
        vmem_limit_bytes=48 * 1024 * 1024,
    )

    # --- Pass 1: fc = relu(src @ W + b), computed once ----------------------
    fc = pl.pallas_call(
        _fc_kernel,
        out_shape=jax.ShapeDtypeStruct((n_src_p, dim_out_p), mm_dtype),
        grid=(n_src_p // ts,),
        in_specs=[
            pl.BlockSpec((ts, dim_in), lambda i: (i, 0)),
            pl.BlockSpec((dim_in, dim_out_p), lambda i: (0, 0)),
            pl.BlockSpec((1, dim_out_p), lambda i: (0, 0)),
        ],
        out_specs=pl.BlockSpec((ts, dim_out_p), lambda i: (i, 0)),
        compiler_params=cparams,
        cost_estimate=pl.CostEstimate(
            flops=2 * n_src_p * dim_in * dim_out_p,
            transcendentals=0,
            bytes_accessed=(n_src_p * dim_in + dim_in * dim_out_p) * itemsize
                           + dim_out_p * 4
                           + n_src_p * dim_out_p * itemsize),
    )(src_p, w_p, b_p)

    # --- Pass 2: collect + normalize, gridded over N_tgt row tiles ----------
    out_p = pl.pallas_call(
        _collect_kernel,
        out_shape=jax.ShapeDtypeStruct((n_tgt_p, dim_out_p), jnp.float32),
        grid=(n_tgt_p // tm,),
        in_specs=[
            pl.BlockSpec((tm, n_src_p), lambda i: (i, 0)),
            pl.BlockSpec((n_src_p, dim_out_p), lambda i: (0, 0)),
        ],
        out_specs=pl.BlockSpec((tm, dim_out_p), lambda i: (i, 0)),
        compiler_params=cparams,
        cost_estimate=pl.CostEstimate(
            flops=2 * n_tgt_p * n_src_p * dim_out_p,
            transcendentals=n_tgt_p,
            bytes_accessed=n_tgt_p * n_src_p * itemsize
                           + n_src_p * dim_out_p * itemsize
                           + n_tgt_p * dim_out_p * 4),
    )(att_p, fc)

    return out_p[:n_tgt, :dim_out]


def reference(source, attention_base, w_t, b):
    fc = jax.nn.relu(source @ w_t + b[None, :])
    collect = attention_base @ fc
    return collect / (attention_base.sum(1, keepdims=True) + 1e-7)


if __name__ == "__main__":
    # Small shapes consistent with the module's forward:
    #   source: [N_src, dim_in], attention_base: [N_tgt, N_src]
    dim_in, dim_out = 32, 64
    n_src, n_tgt = 16, 8

    key = jax.random.PRNGKey(0)
    k_src, k_att, k_w = jax.random.split(key, 3)

    source = jax.random.normal(k_src, (n_src, dim_in), dtype=jnp.float32)
    attention_base = jax.random.uniform(k_att, (n_tgt, n_src), dtype=jnp.float32)

    # Deterministic parameter init mirroring normal_init(fc, 0, 0.01):
    #   weight ~ N(0, 0.01), bias = 0.  nn.Linear weight is [dim_out, dim_in];
    #   we keep it pre-transposed as [dim_in, dim_out] for the kernel.
    w_t = 0.01 * jax.random.normal(k_w, (dim_in, dim_out), dtype=jnp.float32)
    b = jnp.zeros((dim_out,), dtype=jnp.float32)

    out = collection_unit(source, attention_base, w_t, b)
    jax.block_until_ready(out)

    ref = reference(source, attention_base, w_t, b)
    assert out.shape == (n_tgt, dim_out)
    # bf16 MXU operands + approx reciprocal -> compare with relaxed tolerance.
    assert jnp.allclose(out, ref, atol=3e-3, rtol=5e-2), (
        float(jnp.max(jnp.abs(out - ref))))

    print("KERNEL_OK")
</pallas_src>

<mosaic_0001>
module attributes {stable_mosaic.version = 11 : i64} {
  func.func @_fc_kernel(%arg0: i32, %arg1: memref<16x32xbf16, #tpu.memory_space<vmem>>, %arg2: memref<32x128xbf16, #tpu.memory_space<vmem>>, %arg3: memref<1x128xf32, #tpu.memory_space<vmem>>, %arg4: memref<16x128xbf16, #tpu.memory_space<vmem>>) attributes {dimension_semantics = [#tpu.dimension_semantics<parallel>], iteration_bounds = array<i64: 1>, scalar_prefetch = 0 : i64, scratch_operands = 0 : i64, tpu.core_type = #tpu.core_type<tc>, window_params = [{transform_indices = @transform_0, window_bounds = array<i64: 16, 32>}, {pipeline_mode = #tpu.pipeline_mode<synchronous>, transform_indices = @transform_1, window_bounds = array<i64: 32, 128>}, {pipeline_mode = #tpu.pipeline_mode<synchronous>, transform_indices = @transform_2, window_bounds = array<i64: 1, 128>}, {transform_indices = @transform_3, window_bounds = array<i64: 16, 128>}]} {
    %c0 = arith.constant 0 : index
    %c0_0 = arith.constant 0 : index
    %0 = vector.load %arg1[%c0, %c0_0] : memref<16x32xbf16, #tpu.memory_space<vmem>>, vector<16x32xbf16>
    %c0_1 = arith.constant 0 : index
    %c0_2 = arith.constant 0 : index
    %1 = vector.load %arg2[%c0_1, %c0_2] : memref<32x128xbf16, #tpu.memory_space<vmem>>, vector<32x128xbf16>
    %cst = arith.constant dense<0.000000e+00> : vector<16x128xf32>
    %2 = tpu.matmul %0, %1, %cst {dimension_numbers = #tpu.dot_dimension_numbers<[1], [0], [0], [1], [0, 0, 1, 1], [], []>} : vector<16x32xbf16>, vector<32x128xbf16>, vector<16x128xf32> -> vector<16x128xf32>
    %c0_3 = arith.constant 0 : index
    %c0_4 = arith.constant 0 : index
    %3 = vector.load %arg3[%c0_3, %c0_4] : memref<1x128xf32, #tpu.memory_space<vmem>>, vector<1x128xf32>
    %4 = vector.broadcast %3 : vector<1x128xf32> to vector<16x128xf32>
    %5 = arith.addf %2, %4 : vector<16x128xf32>
    %cst_5 = arith.constant 0.000000e+00 : f32
    %6 = vector.broadcast %cst_5 : f32 to vector<16x128xf32>
    %7 = arith.maximumf %5, %6 : vector<16x128xf32>
    %8 = arith.truncf %7 : vector<16x128xf32> to vector<16x128xbf16>
    %c0_6 = arith.constant 0 : index
    %c0_7 = arith.constant 0 : index
    %9 = vector.load %arg4[%c0_6, %c0_7] : memref<16x128xbf16, #tpu.memory_space<vmem>>, vector<16x128xbf16>
    tpu.vector_store %arg4[%c0_6, %c0_7], %8 {strides = array<i32>} : memref<16x128xbf16, #tpu.memory_space<vmem>>, vector<16x128xbf16>,
    return
  }
  func.func @transform_0(%arg0: i32) -> (i32, i32) {
    %c0_i32 = arith.constant 0 : i32
    %c0_i32_0 = arith.constant 0 : i32
    return %arg0, %c0_i32 : i32, i32
  }
  func.func @transform_1(%arg0: i32) -> (i32, i32) {
    %c0_i32 = arith.constant 0 : i32
    %c0_i32_0 = arith.constant 0 : i32
    %c0_i32_1 = arith.constant 0 : i32
    return %c0_i32, %c0_i32_0 : i32, i32
  }
  func.func @transform_2(%arg0: i32) -> (i32, i32) {
    %c0_i32 = arith.constant 0 : i32
    %c0_i32_0 = arith.constant 0 : i32
    %c0_i32_1 = arith.constant 0 : i32
    return %c0_i32, %c0_i32_0 : i32, i32
  }
  func.func @transform_3(%arg0: i32) -> (i32, i32) {
    %c0_i32 = arith.constant 0 : i32
    %c0_i32_0 = arith.constant 0 : i32
    return %arg0, %c0_i32 : i32, i32
  }
}

</mosaic_0001>

<llo_original>
// kernel: tpu_custom_call.1
$region0: #{tpu_custom_call.1}
  #allocation0 [shape = 'u32[]', space=smem, size = 0x4, offset = 0x4, fixed_abs, tag = 'smem constant byte address 0x4 - core index']
  #allocation1 [shape = 'u32[72,128]{1,0:T(1,128)}', space=vmem, size = 0x9000, scoped, tag = 'internal scratch']
  %s0 = inlined_call_operand.hbm [shape: bf16[16,32], index: 0, kind: input, shape index: {}]
  %s1 = inlined_call_operand.hbm [shape: bf16[32,128], index: 1, kind: input, shape index: {}]
  %s2 = inlined_call_operand.vmem [shape: f32[1,128], index: 2, kind: input, shape index: {}]
  %s3 = inlined_call_operand.hbm [shape: bf16[16,128], index: 3, kind: output, shape index: {}]
  %s4 = sld [smem:[#allocation0]]
  $region30: #{tpu_custom_call.1} parent=0
    _
  %s6 = ssub.s32 1, %s4
  %s7 = scalar_select 0, %s6, %s4
  $region1: #{tpu_custom_call.1} parent=0
    #allocation2 [shape = 'u8[4096]{0}', space=vmem, size = 0x1000, scoped, tag = 'input window, operand 0, single buffered']
    #allocation3 [shape = 's32[1]{0}', space=sflag, size = 0x4, scoped, tag = 'scoped memory for tpu_custom_call.1']
    #allocation4 [shape = 's32[1]{0}', space=sflag, size = 0x4, scoped, tag = 'scoped memory for tpu_custom_call.1']
    #allocation5 [shape = 'u8[8192]{0}', space=vmem, size = 0x2000, scoped, tag = 'input window, operand 1, single buffered']
    #allocation6 [shape = 's32[1]{0}', space=sflag, size = 0x4, scoped, tag = 'scoped memory for tpu_custom_call.1']
    #allocation7 [shape = 'u8[4096]{0}', space=vmem, size = 0x1000, scoped, tag = 'output window, operand 0, single buffered']
    %8 = vsyncpa [#allocation3], 0
    %9 = vsyncpa [#allocation6], 0
    %10 = vsyncpa [#allocation4], 0
    // Predicated region
    $region2: #{tpu_custom_call.1} parent=1 // pred_check
      _
    $region3: #{tpu_custom_call.1} parent=1 // pred_check_branch
      %12 = sbr.rel (0) target = $region5
    $region4: #{tpu_custom_call.1} parent=1 // pred_region
      %14 = vsyncadd [#allocation3], 0
      %s15 = sshll.u32 %s0, 4
      %s16 = int_to_ptr.hbm [resolvable:$true] %s15
      %s17 = sshll.u32 [#allocation2], 4
      %s18 = int_to_ptr.vmem [resolvable:$true] %s17
      %23 = dma.hbm_to_vmem [thread:$0]  %s16, 128, %s18, [#allocation3], 64, 64, 4
    $region5: #{tpu_custom_call.1} parent=1 // pred_fallthru
      _
    // Predicated region
    $region6: #{tpu_custom_call.1} parent=1 // pred_check
      _
    $region7: #{tpu_custom_call.1} parent=1 // pred_check_branch
      %25 = sbr.rel (0) target = $region9
    $region8: #{tpu_custom_call.1} parent=1 // pred_region
      %27 = vsyncadd [#allocation6], 0
      %s28 = sshll.u32 %s1, 4
      %s29 = int_to_ptr.hbm [resolvable:$true] %s28
      %s30 = sshll.u32 [#allocation5], 4
      %s31 = int_to_ptr.vmem [resolvable:$true] %s30
      %36 = dma.hbm_to_vmem [thread:$0]  %s29, 256, %s31, [#allocation6], 64, 64, 4
    $region9: #{tpu_custom_call.1} parent=1 // pred_fallthru
      _
    // Predicated region
    $region10: #{tpu_custom_call.1} parent=1 // pred_check
      _
    $region11: #{tpu_custom_call.1} parent=1 // pred_check_branch
      %38 = sbr.rel (0) target = $region13
    $region12: #{tpu_custom_call.1} parent=1 // pred_region
      _
    $region13: #{tpu_custom_call.1} parent=1 // pred_fallthru
      _
    // Predicated region
    $region14: #{tpu_custom_call.1} parent=1 // pred_check
      _
    $region15: #{tpu_custom_call.1} parent=1 // pred_check_branch
      %40 = sbr.rel (0) target = $region17
    $region16: #{tpu_custom_call.1} parent=1 // pred_region
      %42 = dma.done [#allocation3], 128
    $region17: #{tpu_custom_call.1} parent=1 // pred_fallthru
      _
    // Predicated region
    $region18: #{tpu_custom_call.1} parent=1 // pred_check
      _
    $region19: #{tpu_custom_call.1} parent=1 // pred_check_branch
      %44 = sbr.rel (0) target = $region21
    $region20: #{tpu_custom_call.1} parent=1 // pred_region
      %46 = dma.done [#allocation6], 256
    $region21: #{tpu_custom_call.1} parent=1 // pred_fallthru
      _
    %v48 = vld [vmem:[#allocation2] sm:$0xf]
    %v49 = vld [vmem:[#allocation2 + $0x4] sm:$0xf]
    %v50 = vld [vmem:[#allocation5] sm:$0xf]
    %v51 = vld [vmem:[#allocation5 + $0x4] sm:$0xf]
    %v52 = vld [vmem:[#allocation5 + $0x8] sm:$0xf]
    %v53 = vld [vmem:[#allocation5 + $0xc] sm:$0xf]
    %v54 = vld [vmem:[%s2] sm:$0x1]
    %v56 = vperm.slane %v54, 0
    %v60 = vunpack.c.l.b16 %v48
    %v61 = vunpack.c.l.b16 %v49
    %v62 = vpack.c.b16 %v61, %v60
    %v67 = vunpack.c.l.b16 %v50
    %v68 = vunpack.c.l.b16 %v51
    %v69 = vunpack.c.l.b16 %v52
    %v70 = vunpack.c.l.b16 %v53
    %v71 = vpack.c.b16 %v68, %v67
    %v72 = vpack.c.b16 %v70, %v69
    %vm75 = vcmask 261120
    %v77 = vsel %vm75, %v62, 0
    %79 = vmatpush.bf16.msra.mxu0 0
    %80 = vmatpush.bf16.msra.mxu0 0
    %81 = vmatpush.bf16.msra.mxu0 0
    %82 = vmatpush.bf16.msra.mxu0 0
    %83 = vmatpush.bf16.msra.mxu0 0
    %84 = vmatpush.bf16.msra.mxu0 0
    %85 = vmatpush.bf16.msra.mxu0 %v72
    %86 = vmatpush.bf16.msra.mxu0 %v71
    %87 = vmatmul.bf16.gmra.mxu0 %v77
    %v88 = vpop.f32.mrf.mxu0
    %v89 = vadd.f32 %v56, %v88
    %v90 = vpop.f32.mrf.mxu0
    %v91 = vadd.f32 %v56, %v90
    %92 = vdwg.mxu0
    %v93 = vmax.f32 %v89, 0.0
    %v94 = vmax.f32 %v91, 0.0
    %v95 = vpack.c.bf16 %v93, %v93
    %v96 = vpack.c.bf16 %v94, %v94
    %97 = vst [vmem:[#allocation7] sm:$0xf] %v95
    %98 = vst [vmem:[#allocation7 + $0x4] sm:$0xf] %v96
    // Predicated region
    $region22: #{tpu_custom_call.1} parent=1 // pred_check
      _
    $region23: #{tpu_custom_call.1} parent=1 // pred_check_branch
      %100 = sbr.rel (0) target = $region25
    $region24: #{tpu_custom_call.1} parent=1 // pred_region
      %102 = vsyncadd [#allocation4], 0
      %s103 = sshll.u32 [#allocation7], 4
      %s104 = int_to_ptr.vmem [resolvable:$true] %s103
      %s105 = sshll.u32 %s3, 4
      %s106 = int_to_ptr.hbm [resolvable:$true] %s105
      %111 = dma.vmem_to_hbm [thread:$0]  %s104, 128, %s106, [#allocation4], 64, 64, 4
    $region25: #{tpu_custom_call.1} parent=1 // pred_fallthru
      _
    // Predicated region
    $region26: #{tpu_custom_call.1} parent=1 // pred_check
      _
    $region27: #{tpu_custom_call.1} parent=1 // pred_check_branch
      %113 = sbr.rel (0) target = $region29
    $region28: #{tpu_custom_call.1} parent=1 // pred_region
      %115 = dma.done [#allocation4], 128
    $region29: #{tpu_custom_call.1} parent=1 // pred_fallthru
      _
    %116 = vsyncpa [#allocation3], 1
    %117 = vsyncpa [#allocation6], 1
    %118 = vsyncpa [#allocation4], 1

</llo_original>
